<compile_context>
chip_gen: v5e
topology: v5e:2x2
jax: 0.10.0
libtpu: 0.0.40
codegen_flags: <defaults>
</compile_context>

<pallas_src>
import jax
import jax.numpy as jnp
from jax import lax
from jax.experimental import pallas as pl
from jax.experimental.pallas import tpu as pltpu

_LANES = 128
_SUB = 8
_MAX_TILE_ROWS = 2048   # 1 MiB f32 per input block
_CHUNK_ROWS = 256       # rows folded per inner step (128 KiB f32 intermediates)


def _make_boundary_kernel(tile_rows, chunk_rows, num_blocks, rows_last):
    n_chunks = tile_rows // chunk_rows
    ragged = rows_last != tile_rows   # static: only then is masking needed

    def kernel(p_ref, t_ref, acc_ref):
        i = pl.program_id(0)

        @pl.when(i == 0)
        def _():
            acc_ref[...] = jnp.zeros_like(acc_ref)

        if ragged:
            # Number of valid rows in this grid step (only the last block is
            # partial; its out-of-bounds rows hold undefined data).
            valid_rows = jnp.where(i == num_blocks - 1, rows_last, tile_rows)

        def fold(x):
            # (chunk_rows,128) -> (chunk_rows//8, 8, 128) -> sum over the major
            # axis.  Layout-preserving reshape + vreg adds: pure VPU, no XLU.
            return jnp.sum(x.reshape(-1, _SUB, _LANES), axis=0)

        acc_pt = jnp.zeros((_SUB, _LANES), jnp.float32)  # sum(p * t)
        acc_s = jnp.zeros((_SUB, _LANES), jnp.float32)   # sum(p) + sum(t)
        acc_b = jnp.zeros((_SUB, _LANES), jnp.float32)   # +sum of BCE log term

        for c in range(n_chunks):  # static trip count, fully unrolled
            r0 = c * chunk_rows
            p = p_ref[pl.ds(r0, chunk_rows), :].astype(jnp.float32)
            t = t_ref[pl.ds(r0, chunk_rows), :].astype(jnp.float32)

            if ragged:
                # Zero out rows past the logical end of the array.  p = t = 0
                # contributes exactly 0 to all three partial sums (including
                # the clamped BCE term), so masked rows are loss-neutral.
                row_ids = lax.broadcasted_iota(
                    jnp.int32, (chunk_rows, _LANES), 0)
                mask = row_ids < (valid_rows - r0)
                p = jnp.where(mask, p, 0.0)
                t = jnp.where(mask, t, 0.0)

            # PyTorch nn.BCELoss clamps each log term at -100 before reducing;
            # clamp BEFORE multiplying by t so zero rows stay exactly neutral.
            log_p = jnp.maximum(jnp.log(p), -100.0)
            log_1mp = jnp.maximum(jnp.log(1.0 - p), -100.0)
            # -(t*log_p + (1-t)*log_1mp) == -(log_1mp + t*(log_p - log_1mp));
            # the positive form is accumulated, negated once in the epilogue.
            log_term = log_1mp + t * (log_p - log_1mp)

            acc_pt = acc_pt + fold(p * t)
            acc_s = acc_s + fold(p + t)
            acc_b = acc_b + fold(log_term)

        acc_ref[0, :, :] += acc_pt
        acc_ref[1, :, :] += acc_s
        acc_ref[2, :, :] += acc_b

    return kernel


def boundary_loss(logits, targets, weight_dice=0.5, weight_bce=0.5, smooth=1e-05):
    assert logits.shape == targets.shape
    n_elem = logits.size

    # Lane-dense 2-D view: (rows, 128).  At least one (8,128) tile.
    rows = max(pl.cdiv(n_elem, _LANES), _SUB)
    n_view = rows * _LANES

    p_flat = logits.reshape(-1)
    t_flat = targets.reshape(-1)
    if n_view != n_elem:
        # Rare fallback (n_elem not a multiple of 128, or tiny input): costs
        # one extra HBM copy per input.  Zero padding is loss-neutral.
        pad = n_view - n_elem
        p_flat = jnp.pad(p_flat, (0, pad))
        t_flat = jnp.pad(t_flat, (0, pad))
    p2d = p_flat.reshape(rows, _LANES)   # free bitcast in the common case
    t2d = t_flat.reshape(rows, _LANES)

    tile_rows = min(_MAX_TILE_ROWS, (rows // _SUB) * _SUB)   # multiple of 8
    chunk_rows = _CHUNK_ROWS if tile_rows % _CHUNK_ROWS == 0 else tile_rows
    num_blocks = pl.cdiv(rows, tile_rows)
    rows_last = rows - (num_blocks - 1) * tile_rows

    kernel = _make_boundary_kernel(tile_rows, chunk_rows, num_blocks, rows_last)

    in_spec = pl.BlockSpec((tile_rows, _LANES), lambda i: (i, 0))
    out_spec = pl.BlockSpec((3, _SUB, _LANES), lambda i: (0, 0, 0))

    bytes_in = (p2d.size * p2d.dtype.itemsize
                + t2d.size * t2d.dtype.itemsize)
    cost = pl.CostEstimate(
        flops=9 * n_view,
        transcendentals=2 * n_view,
        bytes_accessed=bytes_in + 3 * _SUB * _LANES * 4,
    )

    acc = pl.pallas_call(
        kernel,
        out_shape=jax.ShapeDtypeStruct((3, _SUB, _LANES), jnp.float32),
        grid_spec=pltpu.PrefetchScalarGridSpec(
            num_scalar_prefetch=0,
            grid=(num_blocks,),
            in_specs=[in_spec, in_spec],
            out_specs=out_spec,
        ),
        compiler_params=pltpu.CompilerParams(
            dimension_semantics=("arbitrary",),
        ),
        cost_estimate=cost,
    )(p2d, t2d)

    # Cheap final reduction of the tiny (3, 8, 128) partials in plain JAX.
    partials = jnp.sum(acc, axis=(1, 2))          # -> (3,)
    inter, sum_pt, log_sum = partials[0], partials[1], partials[2]

    bce_mean = -log_sum / jnp.float32(n_elem)     # hoisted negation
    union = sum_pt + smooth
    dice_loss = 1.0 - (2.0 * inter + smooth) / union
    return weight_dice * dice_loss + weight_bce * bce_mean


def _reference(logits, targets, weight_dice=0.5, weight_bce=0.5, smooth=1e-05):
    p = logits.astype(jnp.float32)
    t = targets.astype(jnp.float32)
    inter = jnp.sum(p * t)
    union = jnp.sum(p) + jnp.sum(t) + smooth
    dice = 1.0 - (2.0 * inter + smooth) / union
    bce = jnp.mean(-(t * jnp.maximum(jnp.log(p), -100.0)
                     + (1.0 - t) * jnp.maximum(jnp.log(1.0 - p), -100.0)))
    return weight_dice * dice + weight_bce * bce


if __name__ == "__main__":
    key = jax.random.PRNGKey(0)
    k1, k2, k3, k4 = jax.random.split(key, 4)

    # Small NCHW probability maps (BCELoss expects inputs in (0, 1)).
    shape = (2, 4, 16, 16)
    logits = jax.random.uniform(k1, shape, dtype=jnp.float32,
                                minval=1e-4, maxval=1.0 - 1e-4)
    targets = (jax.random.uniform(k2, shape, dtype=jnp.float32) > 0.5
               ).astype(jnp.float32)

    loss = jax.block_until_ready(boundary_loss(logits, targets))
    ref = _reference(logits, targets)
    assert jnp.allclose(loss, ref, rtol=1e-5, atol=1e-6), (loss, ref)

    # Second check: row count not a multiple of the tile -> exercises the
    # pad-free, in-kernel ragged-tail masking path.
    shape2 = (2, 4, 18, 16)
    logits2 = jax.random.uniform(k3, shape2, dtype=jnp.float32,
                                 minval=1e-4, maxval=1.0 - 1e-4)
    targets2 = (jax.random.uniform(k4, shape2, dtype=jnp.float32) > 0.5
                ).astype(jnp.float32)
    loss2 = jax.block_until_ready(boundary_loss(logits2, targets2))
    ref2 = _reference(logits2, targets2)
    assert jnp.allclose(loss2, ref2, rtol=1e-5, atol=1e-6), (loss2, ref2)

    print("KERNEL_OK")
</pallas_src>

<mosaic_0001>
module attributes {stable_mosaic.version = 11 : i64} {
  func.func @kernel(%arg0: i32, %arg1: memref<16x128xf32, #tpu.memory_space<vmem>>, %arg2: memref<16x128xf32, #tpu.memory_space<vmem>>, %arg3: memref<3x8x128xf32, #tpu.memory_space<vmem>>) attributes {dimension_semantics = [#tpu.dimension_semantics<arbitrary>], iteration_bounds = array<i64: 1>, scalar_prefetch = 0 : i64, scratch_operands = 0 : i64, tpu.core_type = #tpu.core_type<tc>, window_params = [{transform_indices = @transform_0, window_bounds = array<i64: 16, 128>}, {transform_indices = @transform_1, window_bounds = array<i64: 16, 128>}, {pipeline_mode = #tpu.pipeline_mode<synchronous>, transform_indices = @transform_2, window_bounds = array<i64: 3, 8, 128>}]} {
    %c0_i32 = arith.constant 0 : i32
    %0 = arith.cmpi eq, %arg0, %c0_i32 : i32
    %1 = arith.extui %0 : i1 to i32
    %c0_i32_0 = arith.constant 0 : i32
    %2 = arith.cmpi ne, %1, %c0_i32_0 : i32
    scf.if %2 {
      %cst_28 = arith.constant 0.000000e+00 : f32
      %48 = vector.broadcast %cst_28 : f32 to vector<3x8x128xf32>
      %c0_29 = arith.constant 0 : index
      %c0_30 = arith.constant 0 : index
      %c0_31 = arith.constant 0 : index
      %49 = vector.load %arg3[%c0_29, %c0_30, %c0_31] : memref<3x8x128xf32, #tpu.memory_space<vmem>>, vector<3x8x128xf32>
      tpu.vector_store %arg3[%c0_29, %c0_30, %c0_31], %48 {strides = array<i32>} : memref<3x8x128xf32, #tpu.memory_space<vmem>>, vector<3x8x128xf32>,
    } else {
    }
    %cst = arith.constant 0.000000e+00 : f32
    %3 = vector.broadcast %cst : f32 to vector<8x128xf32>
    %cst_1 = arith.constant 0.000000e+00 : f32
    %4 = vector.broadcast %cst_1 : f32 to vector<8x128xf32>
    %cst_2 = arith.constant 0.000000e+00 : f32
    %5 = vector.broadcast %cst_2 : f32 to vector<8x128xf32>
    %c0 = arith.constant 0 : index
    %c0_3 = arith.constant 0 : index
    %6 = vector.load %arg1[%c0, %c0_3] : memref<16x128xf32, #tpu.memory_space<vmem>>, vector<16x128xf32>
    %c0_4 = arith.constant 0 : index
    %c0_5 = arith.constant 0 : index
    %7 = vector.load %arg2[%c0_4, %c0_5] : memref<16x128xf32, #tpu.memory_space<vmem>>, vector<16x128xf32>
    %8 = math.log %6 : vector<16x128xf32>
    %cst_6 = arith.constant -1.000000e+02 : f32
    %9 = vector.broadcast %cst_6 : f32 to vector<16x128xf32>
    %10 = arith.maximumf %8, %9 : vector<16x128xf32>
    %cst_7 = arith.constant 1.000000e+00 : f32
    %11 = vector.broadcast %cst_7 : f32 to vector<16x128xf32>
    %12 = arith.subf %11, %6 : vector<16x128xf32>
    %13 = math.log %12 : vector<16x128xf32>
    %cst_8 = arith.constant -1.000000e+02 : f32
    %14 = vector.broadcast %cst_8 : f32 to vector<16x128xf32>
    %15 = arith.maximumf %13, %14 : vector<16x128xf32>
    %16 = arith.subf %10, %15 : vector<16x128xf32>
    %17 = arith.mulf %7, %16 : vector<16x128xf32>
    %18 = arith.addf %15, %17 : vector<16x128xf32>
    %19 = arith.mulf %6, %7 : vector<16x128xf32>
    %20 = vector.shape_cast %19 : vector<16x128xf32> to vector<2x8x128xf32>
    %cst_9 = arith.constant dense<0.000000e+00> : vector<8x128xf32>
    %21 = vector.multi_reduction <add>, %20, %cst_9 [0] : vector<2x8x128xf32> to vector<8x128xf32>
    %22 = arith.addf %3, %21 : vector<8x128xf32>
    %23 = arith.addf %6, %7 : vector<16x128xf32>
    %24 = vector.shape_cast %23 : vector<16x128xf32> to vector<2x8x128xf32>
    %cst_10 = arith.constant dense<0.000000e+00> : vector<8x128xf32>
    %25 = vector.multi_reduction <add>, %24, %cst_10 [0] : vector<2x8x128xf32> to vector<8x128xf32>
    %26 = arith.addf %4, %25 : vector<8x128xf32>
    %27 = vector.shape_cast %18 : vector<16x128xf32> to vector<2x8x128xf32>
    %cst_11 = arith.constant dense<0.000000e+00> : vector<8x128xf32>
    %28 = vector.multi_reduction <add>, %27, %cst_11 [0] : vector<2x8x128xf32> to vector<8x128xf32>
    %29 = arith.addf %5, %28 : vector<8x128xf32>
    %c0_12 = arith.constant 0 : index
    %c0_13 = arith.constant 0 : index
    %c0_14 = arith.constant 0 : index
    %30 = vector.load %arg3[%c0_12, %c0_13, %c0_14] : memref<3x8x128xf32, #tpu.memory_space<vmem>>, vector<1x8x128xf32>
    %31 = vector.shape_cast %30 : vector<1x8x128xf32> to vector<8x128xf32>
    %32 = arith.addf %31, %22 : vector<8x128xf32>
    %c0_15 = arith.constant 0 : index
    %c0_16 = arith.constant 0 : index
    %c0_17 = arith.constant 0 : index
    %33 = vector.load %arg3[%c0_15, %c0_16, %c0_17] : memref<3x8x128xf32, #tpu.memory_space<vmem>>, vector<1x8x128xf32>
    %34 = vector.shape_cast %33 : vector<1x8x128xf32> to vector<8x128xf32>
    %35 = vector.shape_cast %32 : vector<8x128xf32> to vector<1x8x128xf32>
    tpu.vector_store %arg3[%c0_15, %c0_16, %c0_17], %35 {strides = array<i32>} : memref<3x8x128xf32, #tpu.memory_space<vmem>>, vector<1x8x128xf32>,
    %c1 = arith.constant 1 : index
    %c0_18 = arith.constant 0 : index
    %c0_19 = arith.constant 0 : index
    %36 = vector.load %arg3[%c1, %c0_18, %c0_19] : memref<3x8x128xf32, #tpu.memory_space<vmem>>, vector<1x8x128xf32>
    %37 = vector.shape_cast %36 : vector<1x8x128xf32> to vector<8x128xf32>
    %38 = arith.addf %37, %26 : vector<8x128xf32>
    %c1_20 = arith.constant 1 : index
    %c0_21 = arith.constant 0 : index
    %c0_22 = arith.constant 0 : index
    %39 = vector.load %arg3[%c1_20, %c0_21, %c0_22] : memref<3x8x128xf32, #tpu.memory_space<vmem>>, vector<1x8x128xf32>
    %40 = vector.shape_cast %39 : vector<1x8x128xf32> to vector<8x128xf32>
    %41 = vector.shape_cast %38 : vector<8x128xf32> to vector<1x8x128xf32>
    tpu.vector_store %arg3[%c1_20, %c0_21, %c0_22], %41 {strides = array<i32>} : memref<3x8x128xf32, #tpu.memory_space<vmem>>, vector<1x8x128xf32>,
    %c2 = arith.constant 2 : index
    %c0_23 = arith.constant 0 : index
    %c0_24 = arith.constant 0 : index
    %42 = vector.load %arg3[%c2, %c0_23, %c0_24] : memref<3x8x128xf32, #tpu.memory_space<vmem>>, vector<1x8x128xf32>
    %43 = vector.shape_cast %42 : vector<1x8x128xf32> to vector<8x128xf32>
    %44 = arith.addf %43, %29 : vector<8x128xf32>
    %c2_25 = arith.constant 2 : index
    %c0_26 = arith.constant 0 : index
    %c0_27 = arith.constant 0 : index
    %45 = vector.load %arg3[%c2_25, %c0_26, %c0_27] : memref<3x8x128xf32, #tpu.memory_space<vmem>>, vector<1x8x128xf32>
    %46 = vector.shape_cast %45 : vector<1x8x128xf32> to vector<8x128xf32>
    %47 = vector.shape_cast %44 : vector<8x128xf32> to vector<1x8x128xf32>
    tpu.vector_store %arg3[%c2_25, %c0_26, %c0_27], %47 {strides = array<i32>} : memref<3x8x128xf32, #tpu.memory_space<vmem>>, vector<1x8x128xf32>,
    return
  }
  func.func @transform_0(%arg0: i32) -> (i32, i32) {
    %c0_i32 = arith.constant 0 : i32
    %c0_i32_0 = arith.constant 0 : i32
    return %arg0, %c0_i32 : i32, i32
  }
  func.func @transform_1(%arg0: i32) -> (i32, i32) {
    %c0_i32 = arith.constant 0 : i32
    %c0_i32_0 = arith.constant 0 : i32
    return %arg0, %c0_i32 : i32, i32
  }
  func.func @transform_2(%arg0: i32) -> (i32, i32, i32) {
    %c0_i32 = arith.constant 0 : i32
    %c0_i32_0 = arith.constant 0 : i32
    %c0_i32_1 = arith.constant 0 : i32
    %c0_i32_2 = arith.constant 0 : i32
    return %c0_i32, %c0_i32_0, %c0_i32_1 : i32, i32, i32
  }
}

</mosaic_0001>

<llo_original>
// kernel: tpu_custom_call.1
$region0: #{tpu_custom_call.1}
  #allocation0 [shape = 'u32[]', space=smem, size = 0x4, offset = 0x4, fixed_abs, tag = 'smem constant byte address 0x4 - core index']
  #allocation1 [shape = 'u32[72,128]{1,0:T(1,128)}', space=vmem, size = 0x9000, scoped, tag = 'internal scratch']
  %s0 = inlined_call_operand.hbm [shape: f32[16,128], index: 0, kind: input, shape index: {}]
  %s1 = inlined_call_operand.hbm [shape: f32[16,128], index: 1, kind: input, shape index: {}]
  %s2 = inlined_call_operand.hbm [shape: f32[3,8,128], index: 2, kind: output, shape index: {}]
  %s3 = sld [smem:[#allocation0]]
  $region30: #{tpu_custom_call.1} parent=0
    _
  %s5 = ssub.s32 1, %s3
  %s6 = scalar_select 0, %s5, %s3
  $region1: #{tpu_custom_call.1} parent=0
    #allocation2 [shape = 'u8[8192]{0}', space=vmem, size = 0x2000, scoped, tag = 'input window, operand 0, single buffered']
    #allocation3 [shape = 's32[1]{0}', space=sflag, size = 0x4, scoped, tag = 'scoped memory for tpu_custom_call.1']
    #allocation4 [shape = 's32[1]{0}', space=sflag, size = 0x4, scoped, tag = 'scoped memory for tpu_custom_call.1']
    #allocation5 [shape = 'u8[8192]{0}', space=vmem, size = 0x2000, scoped, tag = 'input window, operand 1, single buffered']
    #allocation6 [shape = 's32[1]{0}', space=sflag, size = 0x4, scoped, tag = 'scoped memory for tpu_custom_call.1']
    #allocation7 [shape = 'u8[12288]{0}', space=vmem, size = 0x3000, scoped, tag = 'output window, operand 0, single buffered']
    %7 = vsyncpa [#allocation3], 0
    %8 = vsyncpa [#allocation6], 0
    %9 = vsyncpa [#allocation4], 0
    // Predicated region
    $region2: #{tpu_custom_call.1} parent=1 // pred_check
      _
    $region3: #{tpu_custom_call.1} parent=1 // pred_check_branch
      %11 = sbr.rel (0) target = $region5
    $region4: #{tpu_custom_call.1} parent=1 // pred_region
      %13 = vsyncadd [#allocation3], 0
      %s14 = sshll.u32 %s0, 4
      %s15 = int_to_ptr.hbm [resolvable:$true] %s14
      %s16 = sshll.u32 [#allocation2], 4
      %s17 = int_to_ptr.vmem [resolvable:$true] %s16
      %22 = dma.hbm_to_vmem [thread:$0]  %s15, 256, %s17, [#allocation3], 128, 128, 8
    $region5: #{tpu_custom_call.1} parent=1 // pred_fallthru
      _
    // Predicated region
    $region6: #{tpu_custom_call.1} parent=1 // pred_check
      _
    $region7: #{tpu_custom_call.1} parent=1 // pred_check_branch
      %24 = sbr.rel (0) target = $region9
    $region8: #{tpu_custom_call.1} parent=1 // pred_region
      %26 = vsyncadd [#allocation6], 0
      %s27 = sshll.u32 %s1, 4
      %s28 = int_to_ptr.hbm [resolvable:$true] %s27
      %s29 = sshll.u32 [#allocation5], 4
      %s30 = int_to_ptr.vmem [resolvable:$true] %s29
      %35 = dma.hbm_to_vmem [thread:$0]  %s28, 256, %s30, [#allocation6], 128, 128, 8
    $region9: #{tpu_custom_call.1} parent=1 // pred_fallthru
      _
    // Predicated region
    $region10: #{tpu_custom_call.1} parent=1 // pred_check
      _
    $region11: #{tpu_custom_call.1} parent=1 // pred_check_branch
      %37 = sbr.rel (0) target = $region13
    $region12: #{tpu_custom_call.1} parent=1 // pred_region
      %39 = dma.done [#allocation3], 256
    $region13: #{tpu_custom_call.1} parent=1 // pred_fallthru
      _
    // Predicated region
    $region14: #{tpu_custom_call.1} parent=1 // pred_check
      _
    $region15: #{tpu_custom_call.1} parent=1 // pred_check_branch
      %41 = sbr.rel (0) target = $region17
    $region16: #{tpu_custom_call.1} parent=1 // pred_region
      %43 = dma.done [#allocation6], 256
    $region17: #{tpu_custom_call.1} parent=1 // pred_fallthru
      _
    %p44 = scmp.eq.s32.totalorder 0, 0
    // Predicated region
    $region18: #{tpu_custom_call.1} parent=1 // pred_check
      %p45 = pneg %p44
    $region19: #{tpu_custom_call.1} parent=1 // pred_check_branch
      %47 = sbr.rel (%p45) target = $region21
    $region20: #{tpu_custom_call.1} parent=1 // pred_region
      %48 = vst [vmem:[#allocation7] sm:$0xff] 0.0
      %49 = vst [vmem:[#allocation7 + $0x8] sm:$0xff] 0.0
      %50 = vst [vmem:[#allocation7 + $0x10] sm:$0xff] 0.0
    $region21: #{tpu_custom_call.1} parent=1 // pred_fallthru
      _
    %v51 = vld [vmem:[#allocation2] sm:$0xff]
    %v52 = vld [vmem:[#allocation2 + $0x8] sm:$0xff]
    %v53 = vld [vmem:[#allocation5] sm:$0xff]
    %v54 = vld [vmem:[#allocation5 + $0x8] sm:$0xff]
    %v55 = vlog2.pop %v51
    %v56 = vmul.f32 %v55, 0.6931472
    %v57 = vlog2.pop %v52
    %v58 = vmul.f32 %v57, 0.6931472
    %v59 = vmax.f32 %v56, -100.0
    %v60 = vmax.f32 %v58, -100.0
    %v61 = vsub.f32 1.0, %v51
    %v62 = vsub.f32 1.0, %v52
    %v63 = vlog2.pop %v61
    %v64 = vmul.f32 %v63, 0.6931472
    %v65 = vlog2.pop %v62
    %v66 = vmul.f32 %v65, 0.6931472
    %v67 = vmax.f32 %v64, -100.0
    %v68 = vmax.f32 %v66, -100.0
    %v69 = vsub.f32 %v59, %v67
    %v70 = vsub.f32 %v60, %v68
    %v71 = vmul.f32 %v53, %v69
    %v72 = vmul.f32 %v54, %v70
    %v73 = vadd.f32 %v67, %v71
    %v74 = vadd.f32 %v68, %v72
    %v75 = vmul.f32 %v51, %v53
    %v76 = vmul.f32 %v52, %v54
    %v77 = vadd.f32 %v75, %v76
    %v78 = vadd.f32 %v77, 0.0
    %v79 = vadd.f32 %v51, %v53
    %v80 = vadd.f32 %v52, %v54
    %v81 = vadd.f32 %v79, %v80
    %v82 = vadd.f32 %v81, 0.0
    %v83 = vadd.f32 %v73, %v74
    %v84 = vadd.f32 %v83, 0.0
    %v85 = vld [vmem:[#allocation7] sm:$0xff]
    %v86 = vadd.f32 %v85, %v78
    %87 = vst [vmem:[#allocation7] sm:$0xff] %v86
    %s88 = scalar_lea.vmem [#allocation7], 8
    %v89 = vld [vmem:[%s88] sm:$0xff]
    %v90 = vadd.f32 %v89, %v82
    %91 = vst [vmem:[%s88] sm:$0xff] %v90
    %s92 = scalar_lea.vmem [#allocation7], 16
    %v93 = vld [vmem:[%s92] sm:$0xff]
    %v94 = vadd.f32 %v93, %v84
    %95 = vst [vmem:[%s92] sm:$0xff] %v94
    // Predicated region
    $region22: #{tpu_custom_call.1} parent=1 // pred_check
      _
    $region23: #{tpu_custom_call.1} parent=1 // pred_check_branch
      %97 = sbr.rel (0) target = $region25
    $region24: #{tpu_custom_call.1} parent=1 // pred_region
      %99 = vsyncadd [#allocation4], 0
      %s100 = sshll.u32 [#allocation7], 4
      %s101 = int_to_ptr.vmem [resolvable:$true] %s100
      %s102 = sshll.u32 %s2, 4
      %s103 = int_to_ptr.hbm [resolvable:$true] %s102
      %108 = dma.vmem_to_hbm [thread:$0]  %s101, 384, %s103, [#allocation4], 128, 128, 8
    $region25: #{tpu_custom_call.1} parent=1 // pred_fallthru
      _
    // Predicated region
    $region26: #{tpu_custom_call.1} parent=1 // pred_check
      _
    $region27: #{tpu_custom_call.1} parent=1 // pred_check_branch
      %110 = sbr.rel (0) target = $region29
    $region28: #{tpu_custom_call.1} parent=1 // pred_region
      %112 = dma.done [#allocation4], 384
    $region29: #{tpu_custom_call.1} parent=1 // pred_fallthru
      _
    %113 = vsyncpa [#allocation3], 1
    %114 = vsyncpa [#allocation6], 1
    %115 = vsyncpa [#allocation4], 1

</llo_original>
